<compile_context>
chip_gen: v5e
topology: v5e:2x2
jax: 0.10.0
libtpu: 0.0.40
codegen_flags: <defaults>
</compile_context>

<pallas_src>
import functools
import math

import jax
import jax.numpy as jnp
from jax.experimental import pallas as pl
from jax.experimental.pallas import tpu as pltpu

NEG_INF = -1e30  # additive mask value (finite -> no NaN in softmax)


# ------------------------------- Pallas kernel --------------------------------
def _vmem_spec():
    return pl.BlockSpec(memory_space=pltpu.MemorySpace.VMEM)


def attention_kernel(x_ref, qid_ref, kid_ref, wqkv_ref, bqkv_ref, wo_ref, bo_ref,
                     o_ref, *, heads):
    """Fused multi-head self-attention on batch-flattened rows.

    x_ref:    (R, C)  bf16, R = batch * padded_tokens (rows flattened)
    qid_ref:  (R, 1)  int32 batch id of each query row
    kid_ref:  (1, R)  int32 batch id of each key (−1 for padded keys)
    wqkv_ref: (C, 3C) bf16 fused q|k|v projection weight
    bqkv_ref: (1, 3C) f32  fused q|k|v bias (zeros: qkv_bias=False)
    wo_ref:   (C, C)  bf16 output-projection weight
    bo_ref:   (1, C)  f32  output-projection bias
    o_ref:    (R, C)  f32
    """
    R, C = x_ref.shape
    hd = C // heads
    scale = hd ** (-0.5)
    bf16 = jnp.bfloat16

    # Additive attention mask built in-kernel (no HBM mask traffic):
    # a key is allowed iff it is a real token of the same batch element.
    allowed = qid_ref[...] == kid_ref[...]                     # (R,1)==(1,R) -> (R,R)
    mask = jnp.where(allowed, jnp.float32(0.0), jnp.float32(NEG_INF))

    # Fused QKV projection: one MXU matmul (N = 3C lanes) instead of three.
    xb = x_ref[...]
    qkv = jnp.dot(xb, wqkv_ref[...],
                  preferred_element_type=jnp.float32) + bqkv_ref[...]   # (R, 3C)
    q = (qkv[:, :C] * scale).astype(bf16)        # scale folded into q (cheaper
    k = qkv[:, C:2 * C].astype(bf16)             # than scaling (R,R) logits)
    v = qkv[:, 2 * C:].astype(bf16)

    acc = jnp.zeros((R, C), jnp.float32)
    for h in range(heads):                       # static unroll over heads
        lo = h * hd
        logits = jax.lax.dot_general(
            q[:, lo:lo + hd], k[:, lo:lo + hd],
            (((1,), (1,)), ((), ())),
            preferred_element_type=jnp.float32)                 # (R, R)
        logits = logits + mask                                  # batch + pad masking
        m = jnp.max(logits, axis=-1, keepdims=True)
        e = jnp.exp(logits - m)
        p = e * pl.reciprocal(jnp.sum(e, axis=-1, keepdims=True), approx=True)
        ctx = jnp.dot(p.astype(bf16), v[:, lo:lo + hd],
                      preferred_element_type=jnp.float32)       # (R, hd)
        # Head output -> output projection WITHOUT a lane concat: push this
        # head's context through its matching rows of wo and accumulate.
        acc = acc + jnp.dot(ctx.astype(bf16), wo_ref[lo:lo + hd, :],
                            preferred_element_type=jnp.float32)

    o_ref[...] = acc + bo_ref[...]


# ------------------------------- JAX wrapper -----------------------------------
def attention_forward(x, params, num_heads):
    """x: (B, N, C) f32 -> (B, N, C) f32, matching PyTorch Attention.forward (eval)."""
    B, N, C = x.shape
    npad = ((N + 7) // 8) * 8                    # sublane-aligned token count
    R = B * npad

    xp = jnp.pad(x.astype(jnp.float32), ((0, 0), (0, npad - N), (0, 0)))
    x2d = xp.reshape(R, C).astype(jnp.bfloat16)

    # Tiny id vectors for the in-kernel mask; padded keys get id -1 (never match).
    bid = jnp.repeat(jnp.arange(B, dtype=jnp.int32), npad)       # (R,)
    tok = jnp.tile(jnp.arange(npad, dtype=jnp.int32), B)         # (R,)
    q_ids = bid.reshape(R, 1)
    k_ids = jnp.where(tok < N, bid, -1).reshape(1, R)

    # Fused QKV weight / bias (qkv_bias=False in the reference -> zero bias).
    wqkv = params["qkv_w"].T.astype(jnp.bfloat16)                # (C, 3C)
    bqkv = params.get("qkv_b", jnp.zeros((3 * C,), jnp.float32))
    bqkv = bqkv.reshape(1, 3 * C).astype(jnp.float32)
    wo = params["proj_w"].T.astype(jnp.bfloat16)                 # (C, C)
    bo = params["proj_b"].reshape(1, C).astype(jnp.float32)

    out2d = pl.pallas_call(
        functools.partial(attention_kernel, heads=num_heads),
        out_shape=jax.ShapeDtypeStruct((R, C), jnp.float32),
        in_specs=[_vmem_spec()] * 7,
        out_specs=_vmem_spec(),
        compiler_params=pltpu.CompilerParams(vmem_limit_bytes=8 * 1024 * 1024),
    )(x2d, q_ids, k_ids, wqkv, bqkv, wo, bo)

    return out2d.reshape(B, npad, C)[:, :N, :]


# --------------------------- pure-JAX reference --------------------------------
def attention_ref(x, params, num_heads):
    B, N, C = x.shape
    hd = C // num_heads
    scale = hd ** (-0.5)
    qkv = x @ params["qkv_w"].T                                  # (B, N, 3C)
    qkv = qkv.reshape(B, N, 3, num_heads, hd).transpose(2, 0, 3, 1, 4)
    q, k, v = qkv[0], qkv[1], qkv[2]                             # (B, H, N, hd)
    attn = jnp.einsum("bhqd,bhkd->bhqk", q, k) * scale
    attn = jax.nn.softmax(attn, axis=-1)
    ctx = jnp.einsum("bhqk,bhkd->bhqd", attn, v)
    ctx = ctx.transpose(0, 2, 1, 3).reshape(B, N, C)
    return ctx @ params["proj_w"].T + params["proj_b"]


# ------------------------------ parameter init ---------------------------------
def init_params(key, dim):
    # nn.Linear default init: U(-1/sqrt(fan_in), 1/sqrt(fan_in))
    k1, k2, k3 = jax.random.split(key, 3)
    bound = 1.0 / math.sqrt(dim)
    return {
        "qkv_w": jax.random.uniform(k1, (3 * dim, dim), jnp.float32, -bound, bound),
        "proj_w": jax.random.uniform(k2, (dim, dim), jnp.float32, -bound, bound),
        "proj_b": jax.random.uniform(k3, (dim,), jnp.float32, -bound, bound),
    }


# ----------------------------------- main ---------------------------------------
if __name__ == "__main__":
    B, N, C, H = 2, 17, 32, 4        # batch, tokens (cls + 16 patches), embed, heads

    key = jax.random.PRNGKey(0)
    k_x, k_p = jax.random.split(key)
    x = jax.random.normal(k_x, (B, N, C), jnp.float32)
    params = init_params(k_p, C)

    fwd = jax.jit(functools.partial(attention_forward, num_heads=H))
    out = fwd(x, params)
    jax.block_until_ready(out)

    assert out.shape == (B, N, C)
    assert bool(jnp.all(jnp.isfinite(out)))

    # correctness vs. the f32 reference (loose tolerance: bf16 matmuls +
    # approximate reciprocal in the softmax normalisation)
    ref = attention_ref(x, params, H)
    max_err = float(jnp.max(jnp.abs(out - ref)))
    assert max_err < 5e-2, f"max abs err {max_err}"

    print("KERNEL_OK")
</pallas_src>

<mosaic_0001>
module attributes {stable_mosaic.version = 11 : i64} {
  func.func @attention_kernel(%arg0: memref<48x32xbf16, #tpu.memory_space<vmem>>, %arg1: memref<48x1xi32, #tpu.memory_space<vmem>>, %arg2: memref<1x48xi32, #tpu.memory_space<vmem>>, %arg3: memref<32x96xbf16, #tpu.memory_space<vmem>>, %arg4: memref<1x96xf32, #tpu.memory_space<vmem>>, %arg5: memref<32x32xbf16, #tpu.memory_space<vmem>>, %arg6: memref<1x32xf32, #tpu.memory_space<vmem>>, %arg7: memref<48x32xf32, #tpu.memory_space<vmem>>) attributes {dimension_semantics = [], scalar_prefetch = 0 : i64, scratch_operands = 0 : i64, tpu.core_type = #tpu.core_type<tc>} {
    %c0 = arith.constant 0 : index
    %c0_0 = arith.constant 0 : index
    %0 = vector.load %arg1[%c0, %c0_0] : memref<48x1xi32, #tpu.memory_space<vmem>>, vector<48x1xi32>
    %c0_1 = arith.constant 0 : index
    %c0_2 = arith.constant 0 : index
    %1 = vector.load %arg2[%c0_1, %c0_2] : memref<1x48xi32, #tpu.memory_space<vmem>>, vector<1x48xi32>
    %2 = vector.broadcast %0 : vector<48x1xi32> to vector<48x48xi32>
    %3 = vector.broadcast %1 : vector<1x48xi32> to vector<48x48xi32>
    %4 = arith.cmpi eq, %2, %3 : vector<48x48xi32>
    %cst = arith.constant 0.000000e+00 : f32
    %cst_3 = arith.constant -1.000000e+30 : f32
    %5 = vector.broadcast %cst : f32 to vector<48x48xf32>
    %6 = vector.broadcast %cst_3 : f32 to vector<48x48xf32>
    %7 = arith.select %4, %5, %6 : vector<48x48xi1>, vector<48x48xf32>
    %c0_4 = arith.constant 0 : index
    %c0_5 = arith.constant 0 : index
    %8 = vector.load %arg0[%c0_4, %c0_5] : memref<48x32xbf16, #tpu.memory_space<vmem>>, vector<48x32xbf16>
    %c0_6 = arith.constant 0 : index
    %c0_7 = arith.constant 0 : index
    %9 = vector.load %arg3[%c0_6, %c0_7] : memref<32x96xbf16, #tpu.memory_space<vmem>>, vector<32x96xbf16>
    %cst_8 = arith.constant dense<0.000000e+00> : vector<48x96xf32>
    %10 = tpu.matmul %8, %9, %cst_8 {dimension_numbers = #tpu.dot_dimension_numbers<[1], [0], [0], [1], [0, 0, 1, 1], [], []>} : vector<48x32xbf16>, vector<32x96xbf16>, vector<48x96xf32> -> vector<48x96xf32>
    %c0_9 = arith.constant 0 : index
    %c0_10 = arith.constant 0 : index
    %11 = vector.load %arg4[%c0_9, %c0_10] : memref<1x96xf32, #tpu.memory_space<vmem>>, vector<1x96xf32>
    %12 = vector.broadcast %11 : vector<1x96xf32> to vector<48x96xf32>
    %13 = arith.addf %10, %12 : vector<48x96xf32>
    %14 = vector.extract_strided_slice %13 {offsets = [0, 0], sizes = [48, 32], strides = [1, 1]} : vector<48x96xf32> to vector<48x32xf32>
    %cst_11 = arith.constant 0.353553385 : f32
    %15 = vector.broadcast %cst_11 : f32 to vector<48x32xf32>
    %16 = arith.mulf %14, %15 : vector<48x32xf32>
    %17 = arith.truncf %16 : vector<48x32xf32> to vector<48x32xbf16>
    %18 = vector.extract_strided_slice %13 {offsets = [0, 32], sizes = [48, 32], strides = [1, 1]} : vector<48x96xf32> to vector<48x32xf32>
    %19 = arith.truncf %18 : vector<48x32xf32> to vector<48x32xbf16>
    %20 = vector.extract_strided_slice %13 {offsets = [0, 64], sizes = [48, 32], strides = [1, 1]} : vector<48x96xf32> to vector<48x32xf32>
    %21 = arith.truncf %20 : vector<48x32xf32> to vector<48x32xbf16>
    %cst_12 = arith.constant 0.000000e+00 : f32
    %22 = vector.broadcast %cst_12 : f32 to vector<48x32xf32>
    %23 = vector.extract_strided_slice %17 {offsets = [0, 0], sizes = [48, 8], strides = [1, 1]} : vector<48x32xbf16> to vector<48x8xbf16>
    %24 = vector.extract_strided_slice %19 {offsets = [0, 0], sizes = [48, 8], strides = [1, 1]} : vector<48x32xbf16> to vector<48x8xbf16>
    %cst_13 = arith.constant dense<0.000000e+00> : vector<48x48xf32>
    %25 = tpu.matmul %23, %24, %cst_13 {dimension_numbers = #tpu.dot_dimension_numbers<[1], [1], [0], [0], [0, 0, 1, 0], [], []>} : vector<48x8xbf16>, vector<48x8xbf16>, vector<48x48xf32> -> vector<48x48xf32>
    %26 = arith.addf %25, %7 : vector<48x48xf32>
    %cst_14 = arith.constant dense<0xFF800000> : vector<48xf32>
    %27 = vector.multi_reduction <maximumf>, %26, %cst_14 [1] : vector<48x48xf32> to vector<48xf32>
    %28 = vector.shape_cast %27 : vector<48xf32> to vector<48x1xf32>
    %29 = vector.broadcast %28 : vector<48x1xf32> to vector<48x48xf32>
    %30 = arith.subf %26, %29 : vector<48x48xf32>
    %31 = math.exp %30 : vector<48x48xf32>
    %cst_15 = arith.constant dense<0.000000e+00> : vector<48xf32>
    %32 = vector.multi_reduction <add>, %31, %cst_15 [1] : vector<48x48xf32> to vector<48xf32>
    %33 = vector.shape_cast %32 : vector<48xf32> to vector<48x1xf32>
    %34 = tpu.reciprocal %33 {approx = true} : vector<48x1xf32> -> vector<48x1xf32>
    %35 = vector.broadcast %34 : vector<48x1xf32> to vector<48x48xf32>
    %36 = arith.mulf %31, %35 : vector<48x48xf32>
    %37 = arith.truncf %36 : vector<48x48xf32> to vector<48x48xbf16>
    %38 = vector.extract_strided_slice %21 {offsets = [0, 0], sizes = [48, 8], strides = [1, 1]} : vector<48x32xbf16> to vector<48x8xbf16>
    %cst_16 = arith.constant dense<0.000000e+00> : vector<48x8xf32>
    %39 = tpu.matmul %37, %38, %cst_16 {dimension_numbers = #tpu.dot_dimension_numbers<[1], [0], [0], [1], [0, 0, 1, 1], [], []>} : vector<48x48xbf16>, vector<48x8xbf16>, vector<48x8xf32> -> vector<48x8xf32>
    %40 = arith.truncf %39 : vector<48x8xf32> to vector<48x8xbf16>
    %c0_17 = arith.constant 0 : index
    %c0_18 = arith.constant 0 : index
    %41 = vector.load %arg5[%c0_17, %c0_18] : memref<32x32xbf16, #tpu.memory_space<vmem>>, vector<8x32xbf16>
    %cst_19 = arith.constant dense<0.000000e+00> : vector<48x32xf32>
    %42 = tpu.matmul %40, %41, %cst_19 {dimension_numbers = #tpu.dot_dimension_numbers<[1], [0], [0], [1], [0, 0, 1, 1], [], []>} : vector<48x8xbf16>, vector<8x32xbf16>, vector<48x32xf32> -> vector<48x32xf32>
    %43 = arith.addf %22, %42 : vector<48x32xf32>
    %44 = vector.extract_strided_slice %17 {offsets = [0, 8], sizes = [48, 8], strides = [1, 1]} : vector<48x32xbf16> to vector<48x8xbf16>
    %45 = vector.extract_strided_slice %19 {offsets = [0, 8], sizes = [48, 8], strides = [1, 1]} : vector<48x32xbf16> to vector<48x8xbf16>
    %cst_20 = arith.constant dense<0.000000e+00> : vector<48x48xf32>
    %46 = tpu.matmul %44, %45, %cst_20 {dimension_numbers = #tpu.dot_dimension_numbers<[1], [1], [0], [0], [0, 0, 1, 0], [], []>} : vector<48x8xbf16>, vector<48x8xbf16>, vector<48x48xf32> -> vector<48x48xf32>
    %47 = arith.addf %46, %7 : vector<48x48xf32>
    %cst_21 = arith.constant dense<0xFF800000> : vector<48xf32>
    %48 = vector.multi_reduction <maximumf>, %47, %cst_21 [1] : vector<48x48xf32> to vector<48xf32>
    %49 = vector.shape_cast %48 : vector<48xf32> to vector<48x1xf32>
    %50 = vector.broadcast %49 : vector<48x1xf32> to vector<48x48xf32>
    %51 = arith.subf %47, %50 : vector<48x48xf32>
    %52 = math.exp %51 : vector<48x48xf32>
    %cst_22 = arith.constant dense<0.000000e+00> : vector<48xf32>
    %53 = vector.multi_reduction <add>, %52, %cst_22 [1] : vector<48x48xf32> to vector<48xf32>
    %54 = vector.shape_cast %53 : vector<48xf32> to vector<48x1xf32>
    %55 = tpu.reciprocal %54 {approx = true} : vector<48x1xf32> -> vector<48x1xf32>
    %56 = vector.broadcast %55 : vector<48x1xf32> to vector<48x48xf32>
    %57 = arith.mulf %52, %56 : vector<48x48xf32>
    %58 = arith.truncf %57 : vector<48x48xf32> to vector<48x48xbf16>
    %59 = vector.extract_strided_slice %21 {offsets = [0, 8], sizes = [48, 8], strides = [1, 1]} : vector<48x32xbf16> to vector<48x8xbf16>
    %cst_23 = arith.constant dense<0.000000e+00> : vector<48x8xf32>
    %60 = tpu.matmul %58, %59, %cst_23 {dimension_numbers = #tpu.dot_dimension_numbers<[1], [0], [0], [1], [0, 0, 1, 1], [], []>} : vector<48x48xbf16>, vector<48x8xbf16>, vector<48x8xf32> -> vector<48x8xf32>
    %61 = arith.truncf %60 : vector<48x8xf32> to vector<48x8xbf16>
    %c8 = arith.constant 8 : index
    %c0_24 = arith.constant 0 : index
    %62 = vector.load %arg5[%c8, %c0_24] : memref<32x32xbf16, #tpu.memory_space<vmem>>, vector<8x32xbf16>
    %cst_25 = arith.constant dense<0.000000e+00> : vector<48x32xf32>
    %63 = tpu.matmul %61, %62, %cst_25 {dimension_numbers = #tpu.dot_dimension_numbers<[1], [0], [0], [1], [0, 0, 1, 1], [], []>} : vector<48x8xbf16>, vector<8x32xbf16>, vector<48x32xf32> -> vector<48x32xf32>
    %64 = arith.addf %43, %63 : vector<48x32xf32>
    %65 = vector.extract_strided_slice %17 {offsets = [0, 16], sizes = [48, 8], strides = [1, 1]} : vector<48x32xbf16> to vector<48x8xbf16>
    %66 = vector.extract_strided_slice %19 {offsets = [0, 16], sizes = [48, 8], strides = [1, 1]} : vector<48x32xbf16> to vector<48x8xbf16>
    %cst_26 = arith.constant dense<0.000000e+00> : vector<48x48xf32>
    %67 = tpu.matmul %65, %66, %cst_26 {dimension_numbers = #tpu.dot_dimension_numbers<[1], [1], [0], [0], [0, 0, 1, 0], [], []>} : vector<48x8xbf16>, vector<48x8xbf16>, vector<48x48xf32> -> vector<48x48xf32>
    %68 = arith.addf %67, %7 : vector<48x48xf32>
    %cst_27 = arith.constant dense<0xFF800000> : vector<48xf32>
    %69 = vector.multi_reduction <maximumf>, %68, %cst_27 [1] : vector<48x48xf32> to vector<48xf32>
    %70 = vector.shape_cast %69 : vector<48xf32> to vector<48x1xf32>
    %71 = vector.broadcast %70 : vector<48x1xf32> to vector<48x48xf32>
    %72 = arith.subf %68, %71 : vector<48x48xf32>
    %73 = math.exp %72 : vector<48x48xf32>
    %cst_28 = arith.constant dense<0.000000e+00> : vector<48xf32>
    %74 = vector.multi_reduction <add>, %73, %cst_28 [1] : vector<48x48xf32> to vector<48xf32>
    %75 = vector.shape_cast %74 : vector<48xf32> to vector<48x1xf32>
    %76 = tpu.reciprocal %75 {approx = true} : vector<48x1xf32> -> vector<48x1xf32>
    %77 = vector.broadcast %76 : vector<48x1xf32> to vector<48x48xf32>
    %78 = arith.mulf %73, %77 : vector<48x48xf32>
    %79 = arith.truncf %78 : vector<48x48xf32> to vector<48x48xbf16>
    %80 = vector.extract_strided_slice %21 {offsets = [0, 16], sizes = [48, 8], strides = [1, 1]} : vector<48x32xbf16> to vector<48x8xbf16>
    %cst_29 = arith.constant dense<0.000000e+00> : vector<48x8xf32>
    %81 = tpu.matmul %79, %80, %cst_29 {dimension_numbers = #tpu.dot_dimension_numbers<[1], [0], [0], [1], [0, 0, 1, 1], [], []>} : vector<48x48xbf16>, vector<48x8xbf16>, vector<48x8xf32> -> vector<48x8xf32>
    %82 = arith.truncf %81 : vector<48x8xf32> to vector<48x8xbf16>
    %c16 = arith.constant 16 : index
    %c0_30 = arith.constant 0 : index
    %83 = vector.load %arg5[%c16, %c0_30] : memref<32x32xbf16, #tpu.memory_space<vmem>>, vector<8x32xbf16>
    %cst_31 = arith.constant dense<0.000000e+00> : vector<48x32xf32>
    %84 = tpu.matmul %82, %83, %cst_31 {dimension_numbers = #tpu.dot_dimension_numbers<[1], [0], [0], [1], [0, 0, 1, 1], [], []>} : vector<48x8xbf16>, vector<8x32xbf16>, vector<48x32xf32> -> vector<48x32xf32>
    %85 = arith.addf %64, %84 : vector<48x32xf32>
    %86 = vector.extract_strided_slice %17 {offsets = [0, 24], sizes = [48, 8], strides = [1, 1]} : vector<48x32xbf16> to vector<48x8xbf16>
    %87 = vector.extract_strided_slice %19 {offsets = [0, 24], sizes = [48, 8], strides = [1, 1]} : vector<48x32xbf16> to vector<48x8xbf16>
    %cst_32 = arith.constant dense<0.000000e+00> : vector<48x48xf32>
    %88 = tpu.matmul %86, %87, %cst_32 {dimension_numbers = #tpu.dot_dimension_numbers<[1], [1], [0], [0], [0, 0, 1, 0], [], []>} : vector<48x8xbf16>, vector<48x8xbf16>, vector<48x48xf32> -> vector<48x48xf32>
    %89 = arith.addf %88, %7 : vector<48x48xf32>
    %cst_33 = arith.constant dense<0xFF800000> : vector<48xf32>
    %90 = vector.multi_reduction <maximumf>, %89, %cst_33 [1] : vector<48x48xf32> to vector<48xf32>
    %91 = vector.shape_cast %90 : vector<48xf32> to vector<48x1xf32>
    %92 = vector.broadcast %91 : vector<48x1xf32> to vector<48x48xf32>
    %93 = arith.subf %89, %92 : vector<48x48xf32>
    %94 = math.exp %93 : vector<48x48xf32>
    %cst_34 = arith.constant dense<0.000000e+00> : vector<48xf32>
    %95 = vector.multi_reduction <add>, %94, %cst_34 [1] : vector<48x48xf32> to vector<48xf32>
    %96 = vector.shape_cast %95 : vector<48xf32> to vector<48x1xf32>
    %97 = tpu.reciprocal %96 {approx = true} : vector<48x1xf32> -> vector<48x1xf32>
    %98 = vector.broadcast %97 : vector<48x1xf32> to vector<48x48xf32>
    %99 = arith.mulf %94, %98 : vector<48x48xf32>
    %100 = arith.truncf %99 : vector<48x48xf32> to vector<48x48xbf16>
    %101 = vector.extract_strided_slice %21 {offsets = [0, 24], sizes = [48, 8], strides = [1, 1]} : vector<48x32xbf16> to vector<48x8xbf16>
    %cst_35 = arith.constant dense<0.000000e+00> : vector<48x8xf32>
    %102 = tpu.matmul %100, %101, %cst_35 {dimension_numbers = #tpu.dot_dimension_numbers<[1], [0], [0], [1], [0, 0, 1, 1], [], []>} : vector<48x48xbf16>, vector<48x8xbf16>, vector<48x8xf32> -> vector<48x8xf32>
    %103 = arith.truncf %102 : vector<48x8xf32> to vector<48x8xbf16>
    %c24 = arith.constant 24 : index
    %c0_36 = arith.constant 0 : index
    %104 = vector.load %arg5[%c24, %c0_36] : memref<32x32xbf16, #tpu.memory_space<vmem>>, vector<8x32xbf16>
    %cst_37 = arith.constant dense<0.000000e+00> : vector<48x32xf32>
    %105 = tpu.matmul %103, %104, %cst_37 {dimension_numbers = #tpu.dot_dimension_numbers<[1], [0], [0], [1], [0, 0, 1, 1], [], []>} : vector<48x8xbf16>, vector<8x32xbf16>, vector<48x32xf32> -> vector<48x32xf32>
    %106 = arith.addf %85, %105 : vector<48x32xf32>
    %c0_38 = arith.constant 0 : index
    %c0_39 = arith.constant 0 : index
    %107 = vector.load %arg6[%c0_38, %c0_39] : memref<1x32xf32, #tpu.memory_space<vmem>>, vector<1x32xf32>
    %108 = vector.broadcast %107 : vector<1x32xf32> to vector<48x32xf32>
    %109 = arith.addf %106, %108 : vector<48x32xf32>
    %c0_40 = arith.constant 0 : index
    %c0_41 = arith.constant 0 : index
    %110 = vector.load %arg7[%c0_40, %c0_41] : memref<48x32xf32, #tpu.memory_space<vmem>>, vector<48x32xf32>
    tpu.vector_store %arg7[%c0_40, %c0_41], %109 {strides = array<i32>} : memref<48x32xf32, #tpu.memory_space<vmem>>, vector<48x32xf32>,
    return
  }
}

</mosaic_0001>

<llo_original>
// kernel: attention_forward.1
$region0: #{attention_forward.1}
  #allocation0 [shape = 'u32[]', space=smem, size = 0x4, offset = 0x4, fixed_abs, tag = 'smem constant byte address 0x4 - core index']
  #allocation1 [shape = 'u32[72,128]{1,0:T(1,128)}', space=vmem, size = 0x9000, scoped, tag = 'internal scratch']
  %s0 = inlined_call_operand.vmem [shape: bf16[48,32], index: 0, kind: input, shape index: {}]
  %s1 = inlined_call_operand.vmem [shape: s32[48,1], index: 1, kind: input, shape index: {}]
  %s2 = inlined_call_operand.vmem [shape: s32[1,48], index: 2, kind: input, shape index: {}]
  %s3 = inlined_call_operand.vmem [shape: bf16[32,96], index: 3, kind: input, shape index: {}]
  %s4 = inlined_call_operand.vmem [shape: f32[1,96], index: 4, kind: input, shape index: {}]
  %s5 = inlined_call_operand.vmem [shape: bf16[32,32], index: 5, kind: input, shape index: {}]
  %s6 = inlined_call_operand.vmem [shape: f32[1,32], index: 6, kind: input, shape index: {}]
  %s7 = inlined_call_operand.vmem [shape: f32[48,32], index: 7, kind: output, shape index: {}]
  %s8 = sld [smem:[#allocation0]]
  $region38: #{attention_forward.1} parent=0
    _
  %s10 = ssub.s32 1, %s8
  %s11 = scalar_select 0, %s10, %s8
  // Predicated region
  $region2: #{attention_forward.1} parent=0 // pred_check
    _
  $region3: #{attention_forward.1} parent=0 // pred_check_branch
    %13 = sbr.rel (0) target = $region5
  $region4: #{attention_forward.1} parent=0 // pred_region
    _
  $region5: #{attention_forward.1} parent=0 // pred_fallthru
    _
  // Predicated region
  $region6: #{attention_forward.1} parent=0 // pred_check
    _
  $region7: #{attention_forward.1} parent=0 // pred_check_branch
    %15 = sbr.rel (0) target = $region9
  $region8: #{attention_forward.1} parent=0 // pred_region
    _
  $region9: #{attention_forward.1} parent=0 // pred_fallthru
    _
  // Predicated region
  $region10: #{attention_forward.1} parent=0 // pred_check
    _
  $region11: #{attention_forward.1} parent=0 // pred_check_branch
    %17 = sbr.rel (0) target = $region13
  $region12: #{attention_forward.1} parent=0 // pred_region
    _
  $region13: #{attention_forward.1} parent=0 // pred_fallthru
    _
  // Predicated region
  $region14: #{attention_forward.1} parent=0 // pred_check
    _
  $region15: #{attention_forward.1} parent=0 // pred_check_branch
    %19 = sbr.rel (0) target = $region17
  $region16: #{attention_forward.1} parent=0 // pred_region
    _
  $region17: #{attention_forward.1} parent=0 // pred_fallthru
    _
  // Predicated region
  $region18: #{attention_forward.1} parent=0 // pred_check
    _
  $region19: #{attention_forward.1} parent=0 // pred_check_branch
    %21 = sbr.rel (0) target = $region21
  $region20: #{attention_forward.1} parent=0 // pred_region
    _
  $region21: #{attention_forward.1} parent=0 // pred_fallthru
    _
  // Predicated region
  $region22: #{attention_forward.1} parent=0 // pred_check
    _
  $region23: #{attention_forward.1} parent=0 // pred_check_branch
    %23 = sbr.rel (0) target = $region25
  $region24: #{attention_forward.1} parent=0 // pred_region
    _
  $region25: #{attention_forward.1} parent=0 // pred_fallthru
    _
  // Predicated region
  $region26: #{attention_forward.1} parent=0 // pred_check
    _
  $region27: #{attention_forward.1} parent=0 // pred_check_branch
    %25 = sbr.rel (0) target = $region29
  $region28: #{attention_forward.1} parent=0 // pred_region
    _
  $region29: #{attention_forward.1} parent=0 // pred_fallthru
    _
  %v27 = vld [vmem:[%s1] sm:$0xff]
  %v28 = vld [vmem:[%s1 + $0x8] sm:$0xff]
  %v29 = vld [vmem:[%s1 + $0x10] sm:$0xff]
  %v30 = vld [vmem:[%s1 + $0x18] sm:$0xff]
  %v31 = vld [vmem:[%s1 + $0x20] sm:$0xff]
  %v32 = vld [vmem:[%s1 + $0x28] sm:$0xff]
  %v33 = vld [vmem:[%s2] sm:$0x1]
  %34 = vset.pattern.permute.xlu0 0
  %35 = vperm.xlu0 %34, %v27
  %v36 = vpop.permute.xlu0 %35
  %37 = vset.pattern.permute.xlu0 0
  %38 = vperm.xlu0 %37, %v28
  %v39 = vpop.permute.xlu0 %38
  %40 = vset.pattern.permute.xlu0 0
  %41 = vperm.xlu0 %40, %v29
  %v42 = vpop.permute.xlu0 %41
  %43 = vset.pattern.permute.xlu0 0
  %44 = vperm.xlu0 %43, %v30
  %v45 = vpop.permute.xlu0 %44
  %46 = vset.pattern.permute.xlu0 0
  %47 = vperm.xlu0 %46, %v31
  %v48 = vpop.permute.xlu0 %47
  %49 = vset.pattern.permute.xlu0 0
  %50 = vperm.xlu0 %49, %v32
  %v51 = vpop.permute.xlu0 %50
  %v52 = vperm.slane %v33, 0
  %vm53 = vcmp.eq.s32.totalorder %v36, %v52
  %vm54 = vcmp.eq.s32.totalorder %v39, %v52
  %vm55 = vcmp.eq.s32.totalorder %v42, %v52
  %vm56 = vcmp.eq.s32.totalorder %v45, %v52
  %vm57 = vcmp.eq.s32.totalorder %v48, %v52
  %vm58 = vcmp.eq.s32.totalorder %v51, %v52
  %v59 = vsel %vm53, 0.0, -1e+30
  %v60 = vsel %vm54, 0.0, -1e+30
  %v61 = vsel %vm55, 0.0, -1e+30
  %v62 = vsel %vm56, 0.0, -1e+30
  %v63 = vsel %vm57, 0.0, -1e+30
  %v64 = vsel %vm58, 0.0, -1e+30
  %v65 = vld [vmem:[%s0] sm:$0xf]
  %v66 = vld [vmem:[%s0 + $0x4] sm:$0xf]
  %v67 = vld [vmem:[%s0 + $0x8] sm:$0xf]
  %v68 = vld [vmem:[%s0 + $0xc] sm:$0xf]
  %v69 = vld [vmem:[%s0 + $0x10] sm:$0xf]
  %v70 = vld [vmem:[%s0 + $0x14] sm:$0xf]
  %v71 = vld [vmem:[%s3] sm:$0xf]
  %v72 = vld [vmem:[%s3 + $0x4] sm:$0xf]
  %v73 = vld [vmem:[%s3 + $0x8] sm:$0xf]
  %v74 = vld [vmem:[%s3 + $0xc] sm:$0xf]
  %v75 = vld [vmem:[%s4] sm:$0x1]
  %v77 = vperm.slane %v75, 0
  %v85 = vunpack.c.l.b16 %v65
  %v86 = vunpack.c.l.b16 %v66
  %v87 = vunpack.c.l.b16 %v67
  %v88 = vunpack.c.l.b16 %v68
  %v89 = vunpack.c.l.b16 %v69
  %v90 = vunpack.c.l.b16 %v70
  %v91 = vpack.c.b16 %v86, %v85
  %v92 = vpack.c.b16 %v88, %v87
  %v93 = vpack.c.b16 %v90, %v89
  %v98 = vunpack.c.l.b16 %v71
  %v99 = vunpack.c.l.b16 %v72
  %v100 = vunpack.c.l.b16 %v73
  %v101 = vunpack.c.l.b16 %v74
  %v102 = vpack.c.b16 %v99, %v98
  %v103 = vpack.c.b16 %v101, %v100
  %vm106 = vcmask 261120
  %v108 = vsel %vm106, %v91, 0
  %v111 = vsel %vm106, %v92, 0
  %v114 = vsel %vm106, %v93, 0
  %116 = vmatpush.bf16.msra.mxu0 0
  %117 = vmatpush.bf16.msra.mxu0 0
  %118 = vmatpush.bf16.msra.mxu0 0
  %119 = vmatpush.bf16.msra.mxu0 0
  %120 = vmatpush.bf16.msra.mxu0 0
  %121 = vmatpush.bf16.msra.mxu0 0
  %122 = vmatpush.bf16.msra.mxu0 %v103
  %123 = vmatpush.bf16.msra.mxu0 %v102
  %124 = vmatmul.bf16.gmra.mxu0 %v108
  %v125 = vpop.f32.mrf.mxu0
  %v126 = vadd.f32 %v77, %v125
  %v127 = vpop.f32.mrf.mxu0
  %v128 = vadd.f32 %v77, %v127
  %129 = vmatmul.bf16.gmra.mxu0 %v111
  %v130 = vpop.f32.mrf.mxu0
  %v131 = vadd.f32 %v77, %v130
  %v132 = vpop.f32.mrf.mxu0
  %v133 = vadd.f32 %v77, %v132
  %134 = vmatmul.bf16.gmra.mxu0 %v114
  %v135 = vpop.f32.mrf.mxu0
  %v136 = vadd.f32 %v77, %v135
  %v137 = vpop.f32.mrf.mxu0
  %v138 = vadd.f32 %v77, %v137
  %139 = vdwg.mxu0
  %v140 = vmul.f32 %v126, 0.35355338
  %v141 = vmul.f32 %v128, 0.35355338
  %v142 = vmul.f32 %v131, 0.35355338
  %v143 = vmul.f32 %v133, 0.35355338
  %v144 = vmul.f32 %v136, 0.35355338
  %v145 = vmul.f32 %v138, 0.35355338
  %v146 = vpack.c.bf16 %v140, %v140
  %v147 = vpack.c.bf16 %v141, %v141
  %v148 = vpack.c.bf16 %v142, %v142
  %v149 = vpack.c.bf16 %v143, %v143
  %v150 = vpack.c.bf16 %v144, %v144
  %v151 = vpack.c.bf16 %v145, %v145
  %v152 = vpack.c.bf16 %v126, %v126
  %v153 = vpack.c.bf16 %v128, %v128
  %v154 = vpack.c.bf16 %v131, %v131
  %v155 = vpack.c.bf16 %v133, %v133
  %v156 = vpack.c.bf16 %v136, %v136
  %v157 = vpack.c.bf16 %v138, %v138
  %v164 = vunpack.c.l.b16 %v146
  %v165 = vunpack.c.l.b16 %v147
  %v166 = vunpack.c.l.b16 %v148
  %v167 = vunpack.c.l.b16 %v149
  %v168 = vunpack.c.l.b16 %v150
  %v169 = vunpack.c.l.b16 %v151
  %v170 = vpack.c.b16 %v165, %v164
  %v171 = vpack.c.b16 %v167, %v166
  %v172 = vpack.c.b16 %v169, %v168
  %v179 = vunpack.c.l.b16 %v152
  %v180 = vunpack.c.l.b16 %v153
  %v181 = vunpack.c.l.b16 %v154
  %v182 = vunpack.c.l.b16 %v155
  %v183 = vunpack.c.l.b16 %v156
  %v184 = vunpack.c.l.b16 %v157
  %v185 = vpack.c.b16 %v180, %v179
  %v186 = vpack.c.b16 %v182, %v181
  %v187 = vpack.c.b16 %v184, %v183
  %188 = vrot.lane.b32.xlu0 %v185, 96
  %v189 = vpop.permute.xlu0 %188
  %190 = vrot.lane.b32.xlu0 %v186, 96
  %v191 = vpop.permute.xlu0 %190
  %192 = vrot.lane.b32.xlu0 %v187, 96
  %v193 = vpop.permute.xlu0 %192
  %vm194 = vcmask 64512
  %v196 = vsel %vm194, %v170, 0
  %v199 = vsel %vm194, %v171, 0
  %v202 = vsel %vm194, %v172, 0
  %v205 = vsel %vm194, %v189, 0
  %v208 = vsel %vm194, %v191, 0
  %v211 = vsel %vm194, %v193, 0
  %213 = vmatpush.bf16.xpose.msra.mxu0 0
  %214 = vmatpush.bf16.xpose.msra.mxu0 0
  %215 = vmatpush.bf16.xpose.msra.mxu0 0
  %216 = vmatpush.bf16.xpose.msra.mxu0 0
  %217 = vmatpush.bf16.xpose.msra.mxu0 0
  %218 = vmatpush.bf16.xpose.msra.mxu0 %v211
  %219 = vmatpush.bf16.xpose.msra.mxu0 %v208
  %220 = vmatpush.bf16.xpose.msra.mxu0 %v205
  %221 = vmatmul.bf16.gmra.mxu0 %v196
  %v222 = vpop.f32.mrf.mxu0
  %v223 = vadd.f32 %v59, %v222
  %v224 = vpop.f32.mrf.mxu0
  %v225 = vadd.f32 %v60, %v224
  %226 = vmatmul.bf16.gmra.mxu0 %v199
  %v227 = vpop.f32.mrf.mxu0
  %v228 = vadd.f32 %v61, %v227
  %v229 = vpop.f32.mrf.mxu0
  %v230 = vadd.f32 %v62, %v229
  %231 = vmatmul.bf16.gmra.mxu0 %v202
  %v232 = vpop.f32.mrf.mxu0
  %v233 = vadd.f32 %v63, %v232
  %v234 = vpop.f32.mrf.mxu0
  %v235 = vadd.f32 %v64, %v234
  %236 = vdwg.mxu0
  %vm237 = vcmask 392192
  %v238 = vsel %vm237, %v223, -inf
  %239 = vmax.xlane.f32.xlu0 %v238
  %v240 = vpop.xlane.xlu0 %239
  %v241 = vsel %vm237, %v225, -inf
  %242 = vmax.xlane.f32.xlu0 %v241
  %v243 = vpop.xlane.xlu0 %242
  %v244 = vsel %vm237, %v228, -inf
  %245 = vmax.xlane.f32.xlu0 %v244
  %v246 = vpop.xlane.xlu0 %245
  %v247 = vsel %vm237, %v230, -inf
  %248 = vmax.xlane.f32.xlu0 %v247
  %v249 = vpop.xlane.xlu0 %248
  %v250 = vsel %vm237, %v233, -inf
  %251 = vmax.xlane.f32.xlu0 %v250
  %v252 = vpop.xlane.xlu0 %251
  %v253 = vsel %vm237, %v235, -inf
  %254 = vmax.xlane.f32.xlu0 %v253
  %v255 = vpop.xlane.xlu0 %254
  %v256 = vsub.f32 %v223, %v240
  %v257 = vsub.f32 %v225, %v243
  %v258 = vsub.f32 %v228, %v246
  %v259 = vsub.f32 %v230, %v249
  %v260 = vsub.f32 %v233, %v252
  %v261 = vsub.f32 %v235, %v255
  %v262 = vmul.f32 %v256, 1.442695
  %v263 = vpow.pop %v262
  %v264 = vmul.f32 %v257, 1.442695
  %v265 = vpow.pop %v264
  %v266 = vmul.f32 %v258, 1.442695
  %v267 = vpow.pop %v266
  %v268 = vmul.f32 %v259, 1.442695
  %v269 = vpow.pop %v268
  %v270 = vmul.f32 %v260, 1.442695
  %v271 = vpow.pop %v270
  %v272 = vmul.f32 %v261, 1.442695
  %v273 = vpow.pop %v272
  %v274 = vsel %vm237, %v263, 0.0
  %275 = vadd.xlane.f32.xlu0 %v274
  %v276 = vpop.xlane.xlu0 %275
  %v277 = vsel %vm237, %v265, 0.0
  %278 = vadd.xlane.f32.xlu0 %v277
  %v279 = vpop.xlane.xlu0 %278
  %v280 = vsel %vm237, %v267, 0.0
  %281 = vadd.xlane.f32.xlu0 %v280
  %v282 = vpop.xlane.xlu0 %281
  %v283 = vsel %vm237, %v269, 0.0
  %284 = vadd.xlane.f32.xlu0 %v283
  %v285 = vpop.xlane.xlu0 %284
  %v286 = vsel %vm237, %v271, 0.0
  %287 = vadd.xlane.f32.xlu0 %v286
  %v288 = vpop.xlane.xlu0 %287
  %v289 = vsel %vm237, %v273, 0.0
  %290 = vadd.xlane.f32.xlu0 %v289
  %v291 = vpop.xlane.xlu0 %290
  %v292 = vrcp.pop %v276
  %v293 = vrcp.pop %v279
  %v294 = vrcp.pop %v282
  %v295 = vrcp.pop %v285
  %v296 = vrcp.pop %v288
  %v297 = vrcp.pop %v291
  %v298 = vmul.f32 %v263, %v292
  %v299 = vmul.f32 %v265, %v293
  %v300 = vmul.f32 %v267, %v294
  %v301 = vmul.f32 %v269, %v295
  %v302 = vmul.f32 %v271, %v296
  %v303 = vmul.f32 %v273, %v297
  %v304 = vpack.c.bf16 %v299, %v298
  %v305 = vpack.c.bf16 %v301, %v300
  %v306 = vpack.c.bf16 %v303, %v302
  %307 = vrot.lane.b32.xlu0 %v185, 64
  %v308 = vpop.permute.xlu0 %307
  %309 = vrot.lane.b32.xlu0 %v186, 64
  %v310 = vpop.permute.xlu0 %309
  %311 = vrot.lane.b32.xlu0 %v187, 64
  %v312 = vpop.permute.xlu0 %311
  %v317 = vsel %vm237, %v304, 0
  %v320 = vsel %vm237, %v305, 0
  %v323 = vsel %vm237, %v306, 0
  %325 = vmatpush.bf16.msra.mxu0 0
  %326 = vmatpush.bf16.msra.mxu0 0
  %327 = vmatpush.bf16.msra.mxu0 0
  %328 = vmatpush.bf16.msra.mxu0 0
  %329 = vmatpush.bf16.msra.mxu0 0
  %330 = vmatpush.bf16.msra.mxu0 %v312
  %331 = vmatpush.bf16.msra.mxu0 %v310
  %332 = vmatpush.bf16.msra.mxu0 %v308
  %333 = vmatmul.bf16.gmra.mxu0 %v317
  %v334 = vpop.f32.mrf.mxu0
  %v335 = vadd.f32 0.0, %v334
  %v336 = vpop.f32.mrf.mxu0
  %v337 = vadd.f32 0.0, %v336
  %338 = vmatmul.bf16.gmra.mxu0 %v320
  %v339 = vpop.f32.mrf.mxu0
  %v340 = vadd.f32 0.0, %v339
  %v341 = vpop.f32.mrf.mxu0
  %v342 = vadd.f32 0.0, %v341
  %343 = vmatmul.bf16.gmra.mxu0 %v323
  %v344 = vpop.f32.mrf.mxu0
  %v345 = vadd.f32 0.0, %v344
  %v346 = vpop.f32.mrf.mxu0
  %v347 = vadd.f32 0.0, %v346
  %348 = vdwg.mxu0
  %v349 = vpack.c.bf16 %v337, %v335
  %v350 = vpack.c.bf16 %v342, %v340
  %v351 = vpack.c.bf16 %v347, %v345
  %v352 = vld [vmem:[%s5] sm:$0xf]
  %353 = vrot.lane.b32.xlu0 %v170, 120
  %v354 = vpop.permute.xlu0 %353
  %355 = vrot.lane.b32.xlu0 %v171, 120
  %v356 = vpop.permute.xlu0 %355
  %357 = vrot.lane.b32.xlu0 %v172, 120
  %v358 = vpop.permute.xlu0 %357
  %359 = vrot.lane.b32.xlu0 %v185, 88
  %v360 = vpop.permute.xlu0 %359
  %361 = vrot.lane.b32.xlu0 %v186, 88
  %v362 = vpop.permute.xlu0 %361
  %363 = vrot.lane.b32.xlu0 %v187, 88
  %v364 = vpop.permute.xlu0 %363
  %v366 = vsel %vm194, %v354, 0
  %v369 = vsel %vm194, %v356, 0
  %v372 = vsel %vm194, %v358, 0
  %v375 = vsel %vm194, %v360, 0
  %v378 = vsel %vm194, %v362, 0
  %v381 = vsel %vm194, %v364, 0
  %383 = vmatpush.bf16.xpose.msra.mxu0 0
  %384 = vmatpush.bf16.xpose.msra.mxu0 0
  %385 = vmatpush.bf16.xpose.msra.mxu0 0
  %386 = vmatpush.bf16.xpose.msra.mxu0 0
  %387 = vmatpush.bf16.xpose.msra.mxu0 0
  %388 = vmatpush.bf16.xpose.msra.mxu0 %v381
  %389 = vmatpush.bf16.xpose.msra.mxu0 %v378
  %390 = vmatpush.bf16.xpose.msra.mxu0 %v375
  %391 = vmatmul.bf16.gmra.mxu0 %v366
  %v392 = vpop.f32.mrf.mxu0
  %v393 = vadd.f32 %v59, %v392
  %v394 = vpop.f32.mrf.mxu0
  %v395 = vadd.f32 %v60, %v394
  %396 = vmatmul.bf16.gmra.mxu0 %v369
  %v397 = vpop.f32.mrf.mxu0
  %v398 = vadd.f32 %v61, %v397
  %v399 = vpop.f32.mrf.mxu0
  %v400 = vadd.f32 %v62, %v399
  %401 = vmatmul.bf16.gmra.mxu0 %v372
  %v402 = vpop.f32.mrf.mxu0
  %v403 = vadd.f32 %v63, %v402
  %v404 = vpop.f32.mrf.mxu0
  %v405 = vadd.f32 %v64, %v404
  %406 = vdwg.mxu0
  %v407 = vsel %vm237, %v393, -inf
  %408 = vmax.xlane.f32.xlu0 %v407
  %v409 = vpop.xlane.xlu0 %408
  %v410 = vsel %vm237, %v395, -inf
  %411 = vmax.xlane.f32.xlu0 %v410
  %v412 = vpop.xlane.xlu0 %411
  %v413 = vsel %vm237, %v398, -inf
  %414 = vmax.xlane.f32.xlu0 %v413
  %v415 = vpop.xlane.xlu0 %414
  %v416 = vsel %vm237, %v400, -inf
  %417 = vmax.xlane.f32.xlu0 %v416
  %v418 = vpop.xlane.xlu0 %417
  %v419 = vsel %vm237, %v403, -inf
  %420 = vmax.xlane.f32.xlu0 %v419
  %v421 = vpop.xlane.xlu0 %420
  %v422 = vsel %vm237, %v405, -inf
  %423 = vmax.xlane.f32.xlu0 %v422
  %v424 = vpop.xlane.xlu0 %423
  %v425 = vsub.f32 %v393, %v409
  %v426 = vsub.f32 %v395, %v412
  %v427 = vsub.f32 %v398, %v415
  %v428 = vsub.f32 %v400, %v418
  %v429 = vsub.f32 %v403, %v421
  %v430 = vsub.f32 %v405, %v424
  %v431 = vmul.f32 %v425, 1.442695
  %v432 = vpow.pop %v431
  %v433 = vmul.f32 %v426, 1.442695
  %v434 = vpow.pop %v433
  %v435 = vmul.f32 %v427, 1.442695
  %v436 = vpow.pop %v435
  %v437 = vmul.f32 %v428, 1.442695
  %v438 = vpow.pop %v437
  %v439 = vmul.f32 %v429, 1.442695
  %v440 = vpow.pop %v439
  %v441 = vmul.f32 %v430, 1.442695
  %v442 = vpow.pop %v441
  %v443 = vsel %vm237, %v432, 0.0
  %444 = vadd.xlane.f32.xlu0 %v443
  %v445 = vpop.xlane.xlu0 %444
  %v446 = vsel %vm237, %v434, 0.0
  %447 = vadd.xlane.f32.xlu0 %v446
  %v448 = vpop.xlane.xlu0 %447
  %v449 = vsel %vm237, %v436, 0.0
  %450 = vadd.xlane.f32.xlu0 %v449
  %v451 = vpop.xlane.xlu0 %450
  %v452 = vsel %vm237, %v438, 0.0
  %453 = vadd.xlane.f32.xlu0 %v452
  %v454 = vpop.xlane.xlu0 %453
  %v455 = vsel %vm237, %v440, 0.0
  %456 = vadd.xlane.f32.xlu0 %v455
  %v457 = vpop.xlane.xlu0 %456
  %v458 = vsel %vm237, %v442, 0.0
  %459 = vadd.xlane.f32.xlu0 %v458
  %v460 = vpop.xlane.xlu0 %459
  %v461 = vrcp.pop %v445
  %v462 = vrcp.pop %v448
  %v463 = vrcp.pop %v451
  %v464 = vrcp.pop %v454
  %v465 = vrcp.pop %v457
  %v466 = vrcp.pop %v460
  %v467 = vmul.f32 %v432, %v461
  %v468 = vmul.f32 %v434, %v462
  %v469 = vmul.f32 %v436, %v463
  %v470 = vmul.f32 %v438, %v464
  %v471 = vmul.f32 %v440, %v465
  %v472 = vmul.f32 %v442, %v466
  %v473 = vpack.c.bf16 %v468, %v467
  %v474 = vpack.c.bf16 %v470, %v469
  %v475 = vpack.c.bf16 %v472, %v471
  %476 = vrot.lane.b32.xlu0 %v185, 56
  %v477 = vpop.permute.xlu0 %476
  %478 = vrot.lane.b32.xlu0 %v186, 56
  %v479 = vpop.permute.xlu0 %478
  %480 = vrot.lane.b32.xlu0 %v187, 56
  %v481 = vpop.permute.xlu0 %480
  %v486 = vsel %vm237, %v473, 0
  %v489 = vsel %vm237, %v474, 0
  %v492 = vsel %vm237, %v475, 0
  %494 = vmatpush.bf16.msra.mxu0 0
  %495 = vmatpush.bf16.msra.mxu0 0
  %496 = vmatpush.bf16.msra.mxu0 0
  %497 = vmatpush.bf16.msra.mxu0 0
  %498 = vmatpush.bf16.msra.mxu0 0
  %499 = vmatpush.bf16.msra.mxu0 %v481
  %500 = vmatpush.bf16.msra.mxu0 %v479
  %501 = vmatpush.bf16.msra.mxu0 %v477
  %502 = vmatmul.bf16.gmra.mxu0 %v486
  %v503 = vpop.f32.mrf.mxu0
  %v504 = vadd.f32 0.0, %v503
  %v505 = vpop.f32.mrf.mxu0
  %v506 = vadd.f32 0.0, %v505
  %507 = vmatmul.bf16.gmra.mxu0 %v489
  %v508 = vpop.f32.mrf.mxu0
  %v509 = vadd.f32 0.0, %v508
  %v510 = vpop.f32.mrf.mxu0
  %v511 = vadd.f32 0.0, %v510
  %512 = vmatmul.bf16.gmra.mxu0 %v492
  %v513 = vpop.f32.mrf.mxu0
  %v514 = vadd.f32 0.0, %v513
  %v515 = vpop.f32.mrf.mxu0
  %v516 = vadd.f32 0.0, %v515
  %517 = vdwg.mxu0
  %v518 = vpack.c.bf16 %v506, %v504
  %v519 = vpack.c.bf16 %v511, %v509
  %v520 = vpack.c.bf16 %v516, %v514
  %v521 = vld [vmem:[%s5 + $0x4] sm:$0xf]
  %v523 = vsel %vm194, %v518, 0
  %v526 = vsel %vm194, %v519, 0
  %v529 = vsel %vm194, %v520, 0
  %vm531 = vcmask 1043456
  %v533 = vsel %vm531, %v521, 0
  %535 = vmatpush.bf16.msra.mxu0 0
  %536 = vmatpush.bf16.msra.mxu0 0
  %537 = vmatpush.bf16.msra.mxu0 0
  %538 = vmatpush.bf16.msra.mxu0 0
  %539 = vmatpush.bf16.msra.mxu0 0
  %540 = vmatpush.bf16.msra.mxu0 0
  %541 = vmatpush.bf16.msra.mxu0 0
  %542 = vmatpush.bf16.msra.mxu0 %v533
  %543 = vmatmul.bf16.gmra.mxu0 %v523
  %v544 = vpop.f32.mrf.mxu0
  %v545 = vadd.f32 0.0, %v544
  %v546 = vpop.f32.mrf.mxu0
  %v547 = vadd.f32 0.0, %v546
  %548 = vmatmul.bf16.gmra.mxu0 %v526
  %v549 = vpop.f32.mrf.mxu0
  %v550 = vadd.f32 0.0, %v549
  %v551 = vpop.f32.mrf.mxu0
  %v552 = vadd.f32 0.0, %v551
  %553 = vmatmul.bf16.gmra.mxu0 %v529
  %v554 = vpop.f32.mrf.mxu0
  %v555 = vadd.f32 0.0, %v554
  %v556 = vpop.f32.mrf.mxu0
  %v557 = vadd.f32 0.0, %v556
  %558 = vdwg.mxu0
  %v560 = vsel %vm194, %v349, 0
  %v563 = vsel %vm194, %v350, 0
  %v566 = vsel %vm194, %v351, 0
  %v569 = vsel %vm531, %v352, 0
  %571 = vmatpush.bf16.msra.mxu0 0
  %572 = vmatpush.bf16.msra.mxu0 0
  %573 = vmatpush.bf16.msra.mxu0 0
  %574 = vmatpush.bf16.msra.mxu0 0
  %575 = vmatpush.bf16.msra.mxu0 0
  %576 = vmatpush.bf16.msra.mxu0 0
  %577 = vmatpush.bf16.msra.mxu0 0
  %578 = vmatpush.bf16.msra.mxu0 %v569
  %579 = vmatmul.bf16.gmra.mxu0 %v560
  %v580 = vpop.f32.mrf.mxu0
  %v581 = vadd.f32 %v545, %v580
  %v582 = vpop.f32.mrf.mxu0
  %v583 = vadd.f32 %v547, %v582
  %584 = vmatmul.bf16.gmra.mxu0 %v563
  %v585 = vpop.f32.mrf.mxu0
  %v586 = vadd.f32 %v550, %v585
  %v587 = vpop.f32.mrf.mxu0
  %v588 = vadd.f32 %v552, %v587
  %589 = vmatmul.bf16.gmra.mxu0 %v566
  %v590 = vpop.f32.mrf.mxu0
  %v591 = vadd.f32 %v555, %v590
  %v592 = vpop.f32.mrf.mxu0
  %v593 = vadd.f32 %v557, %v592
  %594 = vdwg.mxu0
  %595 = vrot.lane.b32.xlu0 %v170, 112
  %v596 = vpop.permute.xlu0 %595
  %597 = vrot.lane.b32.xlu0 %v171, 112
  %v598 = vpop.permute.xlu0 %597
  %599 = vrot.lane.b32.xlu0 %v172, 112
  %v600 = vpop.permute.xlu0 %599
  %601 = vrot.lane.b32.xlu0 %v185, 80
  %v602 = vpop.permute.xlu0 %601
  %603 = vrot.lane.b32.xlu0 %v186, 80
  %v604 = vpop.permute.xlu0 %603
  %605 = vrot.lane.b32.xlu0 %v187, 80
  %v606 = vpop.permute.xlu0 %605
  %v608 = vsel %vm194, %v596, 0
  %v611 = vsel %vm194, %v598, 0
  %v614 = vsel %vm194, %v600, 0
  %v617 = vsel %vm194, %v602, 0
  %v620 = vsel %vm194, %v604, 0
  %v623 = vsel %vm194, %v606, 0
  %625 = vmatpush.bf16.xpose.msra.mxu0 0
  %626 = vmatpush.bf16.xpose.msra.mxu0 0
  %627 = vmatpush.bf16.xpose.msra.mxu0 0
  %628 = vmatpush.bf16.xpose.msra.mxu0 0
  %629 = vmatpush.bf16.xpose.msra.mxu0 0
  %630 = vmatpush.bf16.xpose.msra.mxu0 %v623
  %631 = vmatpush.bf16.xpose.msra.mxu0 %v620
  %632 = vmatpush.bf16.xpose.msra.mxu0 %v617
  %633 = vmatmul.bf16.gmra.mxu0 %v608
  %v634 = vpop.f32.mrf.mxu0
  %v635 = vadd.f32 %v59, %v634
  %v636 = vpop.f32.mrf.mxu0
  %v637 = vadd.f32 %v60, %v636
  %638 = vmatmul.bf16.gmra.mxu0 %v611
  %v639 = vpop.f32.mrf.mxu0
  %v640 = vadd.f32 %v61, %v639
  %v641 = vpop.f32.mrf.mxu0
  %v642 = vadd.f32 %v62, %v641
  %643 = vmatmul.bf16.gmra.mxu0 %v614
  %v644 = vpop.f32.mrf.mxu0
  %v645 = vadd.f32 %v63, %v644
  %v646 = vpop.f32.mrf.mxu0
  %v647 = vadd.f32 %v64, %v646
  %648 = vdwg.mxu0
  %v649 = vsel %vm237, %v635, -inf
  %650 = vmax.xlane.f32.xlu0 %v649
  %v651 = vpop.xlane.xlu0 %650
  %v652 = vsel %vm237, %v637, -inf
  %653 = vmax.xlane.f32.xlu0 %v652
  %v654 = vpop.xlane.xlu0 %653
  %v655 = vsel %vm237, %v640, -inf
  %656 = vmax.xlane.f32.xlu0 %v655
  %v657 = vpop.xlane.xlu0 %656
  %v658 = vsel %vm237, %v642, -inf
  %659 = vmax.xlane.f32.xlu0 %v658
  %v660 = vpop.xlane.xlu0 %659
  %v661 = vsel %vm237, %v645, -inf
  %662 = vmax.xlane.f32.xlu0 %v661
  %v663 = vpop.xlane.xlu0 %662
  %v664 = vsel %vm237, %v647, -inf
  %665 = vmax.xlane.f32.xlu0 %v664
  %v666 = vpop.xlane.xlu0 %665
  %v667 = vsub.f32 %v635, %v651
  %v668 = vsub.f32 %v637, %v654
  %v669 = vsub.f32 %v640, %v657
  %v670 = vsub.f32 %v642, %v660
  %v671 = vsub.f32 %v645, %v663
  %v672 = vsub.f32 %v647, %v666
  %v673 = vmul.f32 %v667, 1.442695
  %v674 = vpow.pop %v673
  %v675 = vmul.f32 %v668, 1.442695
  %v676 = vpow.pop %v675
  %v677 = vmul.f32 %v669, 1.442695
  %v678 = vpow.pop %v677
  %v679 = vmul.f32 %v670, 1.442695
  %v680 = vpow.pop %v679
  %v681 = vmul.f32 %v671, 1.442695
  %v682 = vpow.pop %v681
  %v683 = vmul.f32 %v672, 1.442695
  %v684 = vpow.pop %v683
  %v685 = vsel %vm237, %v674, 0.0
  %686 = vadd.xlane.f32.xlu0 %v685
  %v687 = vpop.xlane.xlu0 %686
  %v688 = vsel %vm237, %v676, 0.0
  %689 = vadd.xlane.f32.xlu0 %v688
  %v690 = vpop.xlane.xlu0 %689
  %v691 = vsel %vm237, %v678, 0.0
  %692 = vadd.xlane.f32.xlu0 %v691
  %v693 = vpop.xlane.xlu0 %692
  %v694 = vsel %vm237, %v680, 0.0
  %695 = vadd.xlane.f32.xlu0 %v694
  %v696 = vpop.xlane.xlu0 %695
  %v697 = vsel %vm237, %v682, 0.0
  %698 = vadd.xlane.f32.xlu0 %v697
  %v699 = vpop.xlane.xlu0 %698
  %v700 = vsel %vm237, %v684, 0.0
  %701 = vadd.xlane.f32.xlu0 %v700
  %v702 = vpop.xlane.xlu0 %701
  %v703 = vrcp.pop %v687
  %v704 = vrcp.pop %v690
  %v705 = vrcp.pop %v693
  %v706 = vrcp.pop %v696
  %v707 = vrcp.pop %v699
  %v708 = vrcp.pop %v702
  %v709 = vmul.f32 %v674, %v703
  %v710 = vmul.f32 %v676, %v704
  %v711 = vmul.f32 %v678, %v705
  %v712 = vmul.f32 %v680, %v706
  %v713 = vmul.f32 %v682, %v707
  %v714 = vmul.f32 %v684, %v708
  %v715 = vpack.c.bf16 %v710, %v709
  %v716 = vpack.c.bf16 %v712, %v711
  %v717 = vpack.c.bf16 %v714, %v713
  %718 = vrot.lane.b32.xlu0 %v185, 48
  %v719 = vpop.permute.xlu0 %718
  %720 = vrot.lane.b32.xlu0 %v186, 48
  %v721 = vpop.permute.xlu0 %720
  %722 = vrot.lane.b32.xlu0 %v187, 48
  %v723 = vpop.permute.xlu0 %722
  %v728 = vsel %vm237, %v715, 0
  %v731 = vsel %vm237, %v716, 0
  %v734 = vsel %vm237, %v717, 0
  %736 = vmatpush.bf16.msra.mxu0 0
  %737 = vmatpush.bf16.msra.mxu0 0
  %738 = vmatpush.bf16.msra.mxu0 0
  %739 = vmatpush.bf16.msra.mxu0 0
  %740 = vmatpush.bf16.msra.mxu0 0
  %741 = vmatpush.bf16.msra.mxu0 %v723
  %742 = vmatpush.bf16.msra.mxu0 %v721
  %743 = vmatpush.bf16.msra.mxu0 %v719
  %744 = vmatmul.bf16.gmra.mxu0 %v728
  %v745 = vpop.f32.mrf.mxu0
  %v746 = vadd.f32 0.0, %v745
  %v747 = vpop.f32.mrf.mxu0
  %v748 = vadd.f32 0.0, %v747
  %749 = vmatmul.bf16.gmra.mxu0 %v731
  %v750 = vpop.f32.mrf.mxu0
  %v751 = vadd.f32 0.0, %v750
  %v752 = vpop.f32.mrf.mxu0
  %v753 = vadd.f32 0.0, %v752
  %754 = vmatmul.bf16.gmra.mxu0 %v734
  %v755 = vpop.f32.mrf.mxu0
  %v756 = vadd.f32 0.0, %v755
  %v757 = vpop.f32.mrf.mxu0
  %v758 = vadd.f32 0.0, %v757
  %759 = vdwg.mxu0
  %v760 = vpack.c.bf16 %v748, %v746
  %v761 = vpack.c.bf16 %v753, %v751
  %v762 = vpack.c.bf16 %v758, %v756
  %v763 = vld [vmem:[%s5 + $0x8] sm:$0xf]
  %v765 = vsel %vm194, %v760, 0
  %v768 = vsel %vm194, %v761, 0
  %v771 = vsel %vm194, %v762, 0
  %v774 = vsel %vm531, %v763, 0
  %776 = vmatpush.bf16.msra.mxu0 0
  %777 = vmatpush.bf16.msra.mxu0 0
  %778 = vmatpush.bf16.msra.mxu0 0
  %779 = vmatpush.bf16.msra.mxu0 0
  %780 = vmatpush.bf16.msra.mxu0 0
  %781 = vmatpush.bf16.msra.mxu0 0
  %782 = vmatpush.bf16.msra.mxu0 0
  %783 = vmatpush.bf16.msra.mxu0 %v774
  %784 = vmatmul.bf16.gmra.mxu0 %v765
  %v785 = vpop.f32.mrf.mxu0
  %v786 = vadd.f32 0.0, %v785
  %v787 = vpop.f32.mrf.mxu0
  %v788 = vadd.f32 0.0, %v787
  %789 = vmatmul.bf16.gmra.mxu0 %v768
  %v790 = vpop.f32.mrf.mxu0
  %v791 = vadd.f32 0.0, %v790
  %v792 = vpop.f32.mrf.mxu0
  %v793 = vadd.f32 0.0, %v792
  %794 = vmatmul.bf16.gmra.mxu0 %v771
  %v795 = vpop.f32.mrf.mxu0
  %v796 = vadd.f32 0.0, %v795
  %v797 = vpop.f32.mrf.mxu0
  %v798 = vadd.f32 0.0, %v797
  %799 = vdwg.mxu0
  %v800 = vadd.f32 %v581, %v786
  %v801 = vadd.f32 %v583, %v788
  %v802 = vadd.f32 %v586, %v791
  %v803 = vadd.f32 %v588, %v793
  %v804 = vadd.f32 %v591, %v796
  %v805 = vadd.f32 %v593, %v798
  %806 = vrot.lane.b32.xlu0 %v170, 104
  %v807 = vpop.permute.xlu0 %806
  %808 = vrot.lane.b32.xlu0 %v171, 104
  %v809 = vpop.permute.xlu0 %808
  %810 = vrot.lane.b32.xlu0 %v172, 104
  %v811 = vpop.permute.xlu0 %810
  %812 = vrot.lane.b32.xlu0 %v185, 72
  %v813 = vpop.permute.xlu0 %812
  %814 = vrot.lane.b32.xlu0 %v186, 72
  %v815 = vpop.permute.xlu0 %814
  %816 = vrot.lane.b32.xlu0 %v187, 72
  %v817 = vpop.permute.xlu0 %816
  %v819 = vsel %vm194, %v807, 0
  %v822 = vsel %vm194, %v809, 0
  %v825 = vsel %vm194, %v811, 0
  %v828 = vsel %vm194, %v813, 0
  %v831 = vsel %vm194, %v815, 0
  %v834 = vsel %vm194, %v817, 0
  %836 = vmatpush.bf16.xpose.msra.mxu0 0
  %837 = vmatpush.bf16.xpose.msra.mxu0 0
  %838 = vmatpush.bf16.xpose.msra.mxu0 0
  %839 = vmatpush.bf16.xpose.msra.mxu0 0
  %840 = vmatpush.bf16.xpose.msra.mxu0 0
  %841 = vmatpush.bf16.xpose.msra.mxu0 %v834
  %842 = vmatpush.bf16.xpose.msra.mxu0 %v831
  %843 = vmatpush.bf16.xpose.msra.mxu0 %v828
  %844 = vmatmul.bf16.gmra.mxu0 %v819
  %v845 = vpop.f32.mrf.mxu0
  %v846 = vadd.f32 %v59, %v845
  %v847 = vpop.f32.mrf.mxu0
  %v848 = vadd.f32 %v60, %v847
  %849 = vmatmul.bf16.gmra.mxu0 %v822
  %v850 = vpop.f32.mrf.mxu0
  %v851 = vadd.f32 %v61, %v850
  %v852 = vpop.f32.mrf.mxu0
  %v853 = vadd.f32 %v62, %v852
  %854 = vmatmul.bf16.gmra.mxu0 %v825
  %v855 = vpop.f32.mrf.mxu0
  %v856 = vadd.f32 %v63, %v855
  %v857 = vpop.f32.mrf.mxu0
  %v858 = vadd.f32 %v64, %v857
  %859 = vdwg.mxu0
  %v860 = vsel %vm237, %v846, -inf
  %861 = vmax.xlane.f32.xlu0 %v860
  %v862 = vpop.xlane.xlu0 %861
  %v863 = vsel %vm237, %v848, -inf
  %864 = vmax.xlane.f32.xlu0 %v863
  %v865 = vpop.xlane.xlu0 %864
  %v866 = vsel %vm237, %v851, -inf
  %867 = vmax.xlane.f32.xlu0 %v866
  %v868 = vpop.xlane.xlu0 %867
  %v869 = vsel %vm237, %v853, -inf
  %870 = vmax.xlane.f32.xlu0 %v869
  %v871 = vpop.xlane.xlu0 %870
  %v872 = vsel %vm237, %v856, -inf
  %873 = vmax.xlane.f32.xlu0 %v872
  %v874 = vpop.xlane.xlu0 %873
  %v875 = vsel %vm237, %v858, -inf
  %876 = vmax.xlane.f32.xlu0 %v875
  %v877 = vpop.xlane.xlu0 %876
  %v878 = vsub.f32 %v846, %v862
  %v879 = vsub.f32 %v848, %v865
  %v880 = vsub.f32 %v851, %v868
  %v881 = vsub.f32 %v853, %v871
  %v882 = vsub.f32 %v856, %v874
  %v883 = vsub.f32 %v858, %v877
  %v884 = vmul.f32 %v878, 1.442695
  %v885 = vpow.pop %v884
  %v886 = vmul.f32 %v879, 1.442695
  %v887 = vpow.pop %v886
  %v888 = vmul.f32 %v880, 1.442695
  %v889 = vpow.pop %v888
  %v890 = vmul.f32 %v881, 1.442695
  %v891 = vpow.pop %v890
  %v892 = vmul.f32 %v882, 1.442695
  %v893 = vpow.pop %v892
  %v894 = vmul.f32 %v883, 1.442695
  %v895 = vpow.pop %v894
  %v896 = vsel %vm237, %v885, 0.0
  %897 = vadd.xlane.f32.xlu0 %v896
  %v898 = vpop.xlane.xlu0 %897
  %v899 = vsel %vm237, %v887, 0.0
  %900 = vadd.xlane.f32.xlu0 %v899
  %v901 = vpop.xlane.xlu0 %900
  %v902 = vsel %vm237, %v889, 0.0
  %903 = vadd.xlane.f32.xlu0 %v902
  %v904 = vpop.xlane.xlu0 %903
  %v905 = vsel %vm237, %v891, 0.0
  %906 = vadd.xlane.f32.xlu0 %v905
  %v907 = vpop.xlane.xlu0 %906
  %v908 = vsel %vm237, %v893, 0.0
  %909 = vadd.xlane.f32.xlu0 %v908
  %v910 = vpop.xlane.xlu0 %909
  %v911 = vsel %vm237, %v895, 0.0
  %912 = vadd.xlane.f32.xlu0 %v911
  %v913 = vpop.xlane.xlu0 %912
  %v914 = vrcp.pop %v898
  %v915 = vrcp.pop %v901
  %v916 = vrcp.pop %v904
  %v917 = vrcp.pop %v907
  %v918 = vrcp.pop %v910
  %v919 = vrcp.pop %v913
  %v920 = vmul.f32 %v885, %v914
  %v921 = vmul.f32 %v887, %v915
  %v922 = vmul.f32 %v889, %v916
  %v923 = vmul.f32 %v891, %v917
  %v924 = vmul.f32 %v893, %v918
  %v925 = vmul.f32 %v895, %v919
  %v926 = vpack.c.bf16 %v921, %v920
  %v927 = vpack.c.bf16 %v923, %v922
  %v928 = vpack.c.bf16 %v925, %v924
  %929 = vrot.lane.b32.xlu0 %v185, 40
  %v930 = vpop.permute.xlu0 %929
  %931 = vrot.lane.b32.xlu0 %v186, 40
  %v932 = vpop.permute.xlu0 %931
  %933 = vrot.lane.b32.xlu0 %v187, 40
  %v934 = vpop.permute.xlu0 %933
  %v939 = vsel %vm237, %v926, 0
  %v942 = vsel %vm237, %v927, 0
  %v945 = vsel %vm237, %v928, 0
  %947 = vmatpush.bf16.msra.mxu0 0
  %948 = vmatpush.bf16.msra.mxu0 0
  %949 = vmatpush.bf16.msra.mxu0 0
  %950 = vmatpush.bf16.msra.mxu0 0
  %951 = vmatpush.bf16.msra.mxu0 0
  %952 = vmatpush.bf16.msra.mxu0 %v934
  %953 = vmatpush.bf16.msra.mxu0 %v932
  %954 = vmatpush.bf16.msra.mxu0 %v930
  %955 = vmatmul.bf16.gmra.mxu0 %v939
  %v956 = vpop.f32.mrf.mxu0
  %v957 = vadd.f32 0.0, %v956
  %v958 = vpop.f32.mrf.mxu0
  %v959 = vadd.f32 0.0, %v958
  %960 = vmatmul.bf16.gmra.mxu0 %v942
  %v961 = vpop.f32.mrf.mxu0
  %v962 = vadd.f32 0.0, %v961
  %v963 = vpop.f32.mrf.mxu0
  %v964 = vadd.f32 0.0, %v963
  %965 = vmatmul.bf16.gmra.mxu0 %v945
  %v966 = vpop.f32.mrf.mxu0
  %v967 = vadd.f32 0.0, %v966
  %v968 = vpop.f32.mrf.mxu0
  %v969 = vadd.f32 0.0, %v968
  %970 = vdwg.mxu0
  %v971 = vpack.c.bf16 %v959, %v957
  %v972 = vpack.c.bf16 %v964, %v962
  %v973 = vpack.c.bf16 %v969, %v967
  %v974 = vld [vmem:[%s5 + $0xc] sm:$0xf]
  %v976 = vsel %vm194, %v971, 0
  %v979 = vsel %vm194, %v972, 0
  %v982 = vsel %vm194, %v973, 0
  %v985 = vsel %vm531, %v974, 0
  %987 = vmatpush.bf16.msra.mxu0 0
  %988 = vmatpush.bf16.msra.mxu0 0
  %989 = vmatpush.bf16.msra.mxu0 0
  %990 = vmatpush.bf16.msra.mxu0 0
  %991 = vmatpush.bf16.msra.mxu0 0
  %992 = vmatpush.bf16.msra.mxu0 0
  %993 = vmatpush.bf16.msra.mxu0 0
  %994 = vmatpush.bf16.msra.mxu0 %v985
  %995 = vmatmul.bf16.gmra.mxu0 %v976
  %v996 = vpop.f32.mrf.mxu0
  %v997 = vadd.f32 0.0, %v996
  %v998 = vpop.f32.mrf.mxu0
  %v999 = vadd.f32 0.0, %v998
  %1000 = vmatmul.bf16.gmra.mxu0 %v979
  %v1001 = vpop.f32.mrf.mxu0
  %v1002 = vadd.f32 0.0, %v1001
  %v1003 = vpop.f32.mrf.mxu0
  %v1004 = vadd.f32 0.0, %v1003
  %1005 = vmatmul.bf16.gmra.mxu0 %v982
  %v1006 = vpop.f32.mrf.mxu0
  %v1007 = vadd.f32 0.0, %v1006
  %v1008 = vpop.f32.mrf.mxu0
  %v1009 = vadd.f32 0.0, %v1008
  %1010 = vdwg.mxu0
  %v1011 = vadd.f32 %v800, %v997
  %v1012 = vadd.f32 %v801, %v999
  %v1013 = vadd.f32 %v802, %v1002
  %v1014 = vadd.f32 %v803, %v1004
  %v1015 = vadd.f32 %v804, %v1007
  %v1016 = vadd.f32 %v805, %v1009
  %v1017 = vld [vmem:[%s6] sm:$0x1]
  %v1019 = vperm.slane %v1017, 0
  %v1021 = vadd.f32 %v1011, %v1019
  %v1022 = vadd.f32 %v1012, %v1019
  %v1023 = vadd.f32 %v1013, %v1019
  %v1024 = vadd.f32 %v1014, %v1019
  %v1025 = vadd.f32 %v1015, %v1019
  %v1026 = vadd.f32 %v1016, %v1019
  %1027 = vst.msk [vmem:[%s7] sm:$0xff] %vm106, %v1021
  %1028 = vst.msk [vmem:[%s7 + $0x8] sm:$0xff] %vm106, %v1022
  %1029 = vst.msk [vmem:[%s7 + $0x10] sm:$0xff] %vm106, %v1023
  %1030 = vst.msk [vmem:[%s7 + $0x18] sm:$0xff] %vm106, %v1024
  %1031 = vst.msk [vmem:[%s7 + $0x20] sm:$0xff] %vm106, %v1025
  %1032 = vst.msk [vmem:[%s7 + $0x28] sm:$0xff] %vm106, %v1026
  // Predicated region
  $region30: #{attention_forward.1} parent=0 // pred_check
    _
  $region31: #{attention_forward.1} parent=0 // pred_check_branch
    %1034 = sbr.rel (0) target = $region33
  $region32: #{attention_forward.1} parent=0 // pred_region
    _
  $region33: #{attention_forward.1} parent=0 // pred_fallthru
    _
  // Predicated region
  $region34: #{attention_forward.1} parent=0 // pred_check
    _
  $region35: #{attention_forward.1} parent=0 // pred_check_branch
    %1036 = sbr.rel (0) target = $region37
  $region36: #{attention_forward.1} parent=0 // pred_region
    _
  $region37: #{attention_forward.1} parent=0 // pred_fallthru
    _

</llo_original>
